<compile_context>
chip_gen: v7x
topology: tpu7x:2x2x1
jax: 0.10.0
libtpu: 0.0.40
codegen_flags: <defaults>
</compile_context>

<pallas_src>
import functools

import jax
import jax.numpy as jnp
from jax.experimental import pallas as pl
from jax.experimental.pallas import tpu as pltpu


def _round_up(x, m):
    return (x + m - 1) // m * m


def _gating_kernel(x_ref, w_ref, b_ref, o_ref):
    # x_ref: (NB, C_in, TL)   spatial-on-lanes input tile (NB = folded batch)
    # w_ref: (C_out, C_in)    1x1x1 conv weight with BN scale folded in
    # b_ref: (C_out, 1)       folded conv-bias + BN shift
    # o_ref: (NB, C_out, TL)  lane-dense output tile
    w = w_ref[...]
    b = b_ref[...]
    for i in range(x_ref.shape[0]):          # NB is small (<= 8) and static
        y = jnp.dot(w, x_ref[i], preferred_element_type=jnp.float32)  # (C_out, TL)
        o_ref[i] = jnp.maximum(y + b, 0.0).astype(o_ref.dtype)


@functools.partial(jax.jit, static_argnames=("eps",))
def unet_grid_gating_signal3(x, conv_w, conv_b, bn_gamma, bn_beta,
                             bn_mean, bn_var, *, eps=1e-5):
    """x: (N, C_in, D, H, W).  conv_w: (C_out, C_in, 1, 1, 1)."""
    n, c_in, d, h, w = x.shape
    c_out = conv_w.shape[0]
    s = d * h * w

    # --- glue: fold eval-mode BN + conv bias into weight / per-channel bias ---
    w2d = conv_w.reshape(c_out, c_in).astype(jnp.float32)
    s_bn = bn_gamma / jnp.sqrt(bn_var + eps)                 # (C_out,)
    w_eff = w2d * s_bn[:, None]                              # (C_out, C_in)
    b_eff = ((conv_b - bn_mean) * s_bn + bn_beta).reshape(c_out, 1)

    # --- glue: spatial dim on lanes (plain reshape, no pad/transpose/copy) ----
    x3 = x.reshape(n, c_in, s)

    # --- block layout & lane-tile size from a VMEM budget ---------------------
    fold_batch = n <= 8                      # fold small batches into one block
    nb = n if fold_batch else 1
    elt = jnp.dtype(x.dtype).itemsize
    buf_budget = 24 * 1024 * 1024            # double-buffered in+out tiles
    bytes_per_lane = 2 * nb * (c_in + c_out) * elt           # 2 = double buffer
    tl_eff = max(128, (buf_budget // bytes_per_lane) // 128 * 128)
    tl_eff = min(tl_eff, _round_up(s, 128))
    if fold_batch and s > 256:
        # Keep >= 2 lane blocks so the grid shards across both v7x TensorCores.
        tl_eff = min(tl_eff, _round_up(pl.cdiv(s, 2), 128))
    num_j = pl.cdiv(s, tl_eff)               # last block may be ragged; Pallas
                                             # masks its edge stores (no pad/slice)

    if fold_batch:
        grid = (num_j,)
        in_specs = [
            pl.BlockSpec((n, c_in, tl_eff), lambda j: (0, 0, j)),
            pl.BlockSpec((c_out, c_in), lambda j: (0, 0)),
            pl.BlockSpec((c_out, 1), lambda j: (0, 0)),
        ]
        out_specs = pl.BlockSpec((n, c_out, tl_eff), lambda j: (0, 0, j))
        dims = ("parallel",)
    else:
        grid = (n, num_j)
        in_specs = [
            pl.BlockSpec((1, c_in, tl_eff), lambda i, j: (i, 0, j)),
            pl.BlockSpec((c_out, c_in), lambda i, j: (0, 0)),
            pl.BlockSpec((c_out, 1), lambda i, j: (0, 0)),
        ]
        out_specs = pl.BlockSpec((1, c_out, tl_eff), lambda i, j: (i, 0, j))
        dims = ("parallel", "parallel")

    out = pl.pallas_call(
        _gating_kernel,
        out_shape=jax.ShapeDtypeStruct((n, c_out, s), x.dtype),
        grid_spec=pl.GridSpec(grid=grid, in_specs=in_specs, out_specs=out_specs),
        compiler_params=pltpu.CompilerParams(
            dimension_semantics=dims,
            vmem_limit_bytes=48 * 1024 * 1024),
        cost_estimate=pl.CostEstimate(
            flops=2 * n * s * c_in * c_out,
            transcendentals=0,
            bytes_accessed=elt * n * s * (c_in + c_out)),
    )(x3, w_eff, b_eff)

    return out.reshape(n, c_out, d, h, w)


def _init_params(key, c_in, c_out):
    """Deterministic init mirroring the module's __init__ (kaiming for conv,
    N(1, 0.02) / 0 for BN, fresh running stats)."""
    k_w, k_b, k_g = jax.random.split(key, 3)
    fan_in = c_in * 1 * 1 * 1
    conv_w = jax.random.normal(k_w, (c_out, c_in, 1, 1, 1), jnp.float32) * jnp.sqrt(2.0 / fan_in)
    bound = 1.0 / jnp.sqrt(fan_in)
    conv_b = jax.random.uniform(k_b, (c_out,), jnp.float32, -bound, bound)
    bn_gamma = 1.0 + 0.02 * jax.random.normal(k_g, (c_out,), jnp.float32)
    bn_beta = jnp.zeros((c_out,), jnp.float32)
    bn_mean = jnp.zeros((c_out,), jnp.float32)
    bn_var = jnp.ones((c_out,), jnp.float32)
    return conv_w, conv_b, bn_gamma, bn_beta, bn_mean, bn_var


def _reference(x, conv_w, conv_b, bn_gamma, bn_beta, bn_mean, bn_var, eps=1e-5):
    # Pure-JAX reference: 1x1x1 conv == channel einsum, then eval BN + ReLU.
    z = jnp.einsum("ncdhw,oc->nodhw", x,
                   conv_w.reshape(conv_w.shape[0], conv_w.shape[1]))
    z = z + conv_b[None, :, None, None, None]
    s = bn_gamma / jnp.sqrt(bn_var + eps)
    z = z * s[None, :, None, None, None] + (bn_beta - bn_mean * s)[None, :, None, None, None]
    return jnp.maximum(z, 0.0)


if __name__ == "__main__":
    key = jax.random.PRNGKey(0)
    k_x, k_p, k_x2 = jax.random.split(key, 3)

    N, C_IN, C_OUT, D, H, W = 2, 4, 8, 8, 16, 16
    x = jax.random.normal(k_x, (N, C_IN, D, H, W), jnp.float32)
    params = _init_params(k_p, C_IN, C_OUT)

    out = jax.block_until_ready(unet_grid_gating_signal3(x, *params))
    ref = _reference(x, *params)
    assert out.shape == (N, C_OUT, D, H, W), out.shape
    assert jnp.allclose(out, ref, atol=1e-5, rtol=1e-5), float(jnp.max(jnp.abs(out - ref)))

    # Ragged spatial extent (S = 7*9*11 = 693, not a multiple of 128) exercises
    # the masked edge block that replaced the wrapper-side pad/slice.
    x2 = jax.random.normal(k_x2, (N, C_IN, 7, 9, 11), jnp.float32)
    out2 = jax.block_until_ready(unet_grid_gating_signal3(x2, *params))
    ref2 = _reference(x2, *params)
    assert out2.shape == (N, C_OUT, 7, 9, 11), out2.shape
    assert jnp.allclose(out2, ref2, atol=1e-5, rtol=1e-5), float(jnp.max(jnp.abs(out2 - ref2)))

    print("KERNEL_OK")
</pallas_src>

<mosaic_0001>
module attributes {stable_mosaic.version = 11 : i64} {
  func.func @_gating_kernel(%arg0: i32, %arg1: memref<2x4x1024xf32, #tpu.memory_space<vmem>>, %arg2: memref<8x4xf32, #tpu.memory_space<vmem>>, %arg3: memref<8x1xf32, #tpu.memory_space<vmem>>, %arg4: memref<2x8x1024xf32, #tpu.memory_space<vmem>>) attributes {dimension_semantics = [#tpu.dimension_semantics<parallel>], iteration_bounds = array<i64: 2>, scalar_prefetch = 0 : i64, scratch_operands = 0 : i64, tpu.core_type = #tpu.core_type<tc>, window_params = [{transform_indices = @transform_0, window_bounds = array<i64: 2, 4, 1024>}, {pipeline_mode = #tpu.pipeline_mode<synchronous>, transform_indices = @transform_1, window_bounds = array<i64: 8, 4>}, {pipeline_mode = #tpu.pipeline_mode<synchronous>, transform_indices = @transform_2, window_bounds = array<i64: 8, 1>}, {transform_indices = @transform_3, window_bounds = array<i64: 2, 8, 1024>}]} {
    %c0 = arith.constant 0 : index
    %c0_0 = arith.constant 0 : index
    %0 = vector.load %arg2[%c0, %c0_0] : memref<8x4xf32, #tpu.memory_space<vmem>>, vector<8x4xf32>
    %c0_1 = arith.constant 0 : index
    %c0_2 = arith.constant 0 : index
    %1 = vector.load %arg3[%c0_1, %c0_2] : memref<8x1xf32, #tpu.memory_space<vmem>>, vector<8x1xf32>
    %c0_3 = arith.constant 0 : index
    %c0_4 = arith.constant 0 : index
    %c0_5 = arith.constant 0 : index
    %2 = vector.load %arg1[%c0_3, %c0_4, %c0_5] : memref<2x4x1024xf32, #tpu.memory_space<vmem>>, vector<1x4x1024xf32>
    %3 = vector.shape_cast %2 : vector<1x4x1024xf32> to vector<4x1024xf32>
    %cst = arith.constant dense<0.000000e+00> : vector<8x1024xf32>
    %4 = tpu.matmul %0, %3, %cst {dimension_numbers = #tpu.dot_dimension_numbers<[1], [0], [0], [1], [0, 0, 1, 1], [], []>} : vector<8x4xf32>, vector<4x1024xf32>, vector<8x1024xf32> -> vector<8x1024xf32>
    %5 = vector.broadcast %1 : vector<8x1xf32> to vector<8x1024xf32>
    %6 = arith.addf %4, %5 : vector<8x1024xf32>
    %cst_6 = arith.constant 0.000000e+00 : f32
    %7 = vector.broadcast %cst_6 : f32 to vector<8x1024xf32>
    %8 = arith.maximumf %6, %7 : vector<8x1024xf32>
    %c0_7 = arith.constant 0 : index
    %c0_8 = arith.constant 0 : index
    %c0_9 = arith.constant 0 : index
    %9 = vector.load %arg4[%c0_7, %c0_8, %c0_9] : memref<2x8x1024xf32, #tpu.memory_space<vmem>>, vector<1x8x1024xf32>
    %10 = vector.shape_cast %9 : vector<1x8x1024xf32> to vector<8x1024xf32>
    %11 = vector.shape_cast %8 : vector<8x1024xf32> to vector<1x8x1024xf32>
    tpu.vector_store %arg4[%c0_7, %c0_8, %c0_9], %11 {strides = array<i32>} : memref<2x8x1024xf32, #tpu.memory_space<vmem>>, vector<1x8x1024xf32>,
    %c1 = arith.constant 1 : index
    %c0_10 = arith.constant 0 : index
    %c0_11 = arith.constant 0 : index
    %12 = vector.load %arg1[%c1, %c0_10, %c0_11] : memref<2x4x1024xf32, #tpu.memory_space<vmem>>, vector<1x4x1024xf32>
    %13 = vector.shape_cast %12 : vector<1x4x1024xf32> to vector<4x1024xf32>
    %cst_12 = arith.constant dense<0.000000e+00> : vector<8x1024xf32>
    %14 = tpu.matmul %0, %13, %cst_12 {dimension_numbers = #tpu.dot_dimension_numbers<[1], [0], [0], [1], [0, 0, 1, 1], [], []>} : vector<8x4xf32>, vector<4x1024xf32>, vector<8x1024xf32> -> vector<8x1024xf32>
    %15 = vector.broadcast %1 : vector<8x1xf32> to vector<8x1024xf32>
    %16 = arith.addf %14, %15 : vector<8x1024xf32>
    %cst_13 = arith.constant 0.000000e+00 : f32
    %17 = vector.broadcast %cst_13 : f32 to vector<8x1024xf32>
    %18 = arith.maximumf %16, %17 : vector<8x1024xf32>
    %c1_14 = arith.constant 1 : index
    %c0_15 = arith.constant 0 : index
    %c0_16 = arith.constant 0 : index
    %19 = vector.load %arg4[%c1_14, %c0_15, %c0_16] : memref<2x8x1024xf32, #tpu.memory_space<vmem>>, vector<1x8x1024xf32>
    %20 = vector.shape_cast %19 : vector<1x8x1024xf32> to vector<8x1024xf32>
    %21 = vector.shape_cast %18 : vector<8x1024xf32> to vector<1x8x1024xf32>
    tpu.vector_store %arg4[%c1_14, %c0_15, %c0_16], %21 {strides = array<i32>} : memref<2x8x1024xf32, #tpu.memory_space<vmem>>, vector<1x8x1024xf32>,
    return
  }
  func.func @transform_0(%arg0: i32) -> (i32, i32, i32) {
    %c0_i32 = arith.constant 0 : i32
    %c0_i32_0 = arith.constant 0 : i32
    %c0_i32_1 = arith.constant 0 : i32
    return %c0_i32, %c0_i32_0, %arg0 : i32, i32, i32
  }
  func.func @transform_1(%arg0: i32) -> (i32, i32) {
    %c0_i32 = arith.constant 0 : i32
    %c0_i32_0 = arith.constant 0 : i32
    %c0_i32_1 = arith.constant 0 : i32
    return %c0_i32, %c0_i32_0 : i32, i32
  }
  func.func @transform_2(%arg0: i32) -> (i32, i32) {
    %c0_i32 = arith.constant 0 : i32
    %c0_i32_0 = arith.constant 0 : i32
    %c0_i32_1 = arith.constant 0 : i32
    return %c0_i32, %c0_i32_0 : i32, i32
  }
  func.func @transform_3(%arg0: i32) -> (i32, i32, i32) {
    %c0_i32 = arith.constant 0 : i32
    %c0_i32_0 = arith.constant 0 : i32
    %c0_i32_1 = arith.constant 0 : i32
    return %c0_i32, %c0_i32_0, %arg0 : i32, i32, i32
  }
}

</mosaic_0001>

<llo_original>
// kernel: unet_grid_gating_signal3.1
$region0: #{unet_grid_gating_signal3.1}
  #allocation0 [shape = 'u32[]', space=smem, size = 0x4, offset = 0x4, fixed_abs, tag = 'smem constant byte address 0x4 - core index']
  #allocation1 [shape = 'u32[144,128]{1,0:T(1,128)}', space=vmem, size = 0x12000, scoped, tag = 'internal scratch']
  %s0 = inlined_call_operand.vmem [shape: f32[2,4,2048], index: 0, kind: input, shape index: {}]
  %s1 = inlined_call_operand.vmem [shape: f32[8,4], index: 1, kind: input, shape index: {}]
  %s2 = inlined_call_operand.vmem [shape: f32[8,1], index: 2, kind: input, shape index: {}]
  %s3 = inlined_call_operand.vmem [shape: f32[2,8,2048], index: 3, kind: output, shape index: {}]
  %s4 = sld [smem:[#allocation0]]
  $region87: #{unet_grid_gating_signal3.1} parent=0
    _
  %s6 = ssub.s32 1, %s4
  %s7 = scalar_select 0, %s6, %s4
  $region1: #{unet_grid_gating_signal3.1} parent=0
    #allocation2 [shape = 'u8[65536]{0}', space=vmem, size = 0x10000, scoped, tag = 'input window, operand 0']
    #allocation3 [shape = 'u8[131072]{0}', space=vmem, size = 0x20000, scoped, tag = 'output window, operand 0']
    loop: start=0, step=1, limit=4
    $region2: #{unet_grid_gating_signal3.1} parent=1 // loop_pre_header
      _
    $region3: #{unet_grid_gating_signal3.1} parent=1 // loop_header
      %s9 = sphi 0, %s13
      %p10 = scmp.ge.s32.totalorder %s9, 4
      %s19 = sphi 0, %s21
      %s22 = sphi 0, %s19
      %s23 = sphi 0, %s22
      %s39 = sphi 0, %s23
      %s43 = sphi 0, %s43
      %s45 = sphi 0, %s43
      %s46 = sphi 0, %s45
      %s60 = sphi 0, %s46
      %s64 = sphi 0, %s64
      %s66 = sphi 0, %s64
      %s67 = sphi 0, %s66
      %s81 = sphi 0, %s67
      %s87 = sphi 0, %s89
      %s90 = sphi 0, %s87
      %s91 = sphi 0, %s90
      %s107 = sphi 0, %s91
    $region4: #{unet_grid_gating_signal3.1} parent=1 // loop_header_branch
      %12 = sbr.rel (%p10) target = $region8
    $region5: #{unet_grid_gating_signal3.1} parent=1 // loop_body
      %s14 = ssub.s32 %s9, 1
      %s15 = ssub.s32 %s9, 2
      %s16 = sadd.s32 %s9, 1
      %s17 = ssub.s32 %s9, %s16
      %p18 = scmp.eq.s32.totalorder %s17, 0
      %s20 = sadd.s32 %s19, 1
      %s21 = scalar_select %p18, %s19, %s20
      %p24 = pneg %p18
      %p25 = scmp.eq.s32.totalorder %s9, 1
      %p26 = por %p24, %p25
      %p27 = scmp.ne.s32.totalorder %s19, %s22
      %p28 = scmp.eq.s32.totalorder %s9, 0
      %p29 = por %p27, %p28
      %p30 = scmp.ne.s32.totalorder %s19, %s22
      %p31 = scmp.eq.s32.totalorder %s14, 1
      %p32 = por %p30, %p31
      %p33 = scmp.ne.s32.totalorder %s22, %s23
      %p34 = scmp.eq.s32.totalorder %s14, 0
      %p35 = por %p33, %p34
      %p36 = scmp.ne.s32.totalorder %s22, %s23
      %p37 = scmp.eq.s32.totalorder %s15, 1
      %p38 = por %p36, %p37
      %p40 = scmp.ne.s32.totalorder %s23, %s39
      %p41 = scmp.eq.s32.totalorder %s15, 0
      %p42 = por %p40, %p41
      %s44 = sadd.s32 %s43, 1
      %p47 = scmp.eq.s32.totalorder %s9, 1
      %p48 = scmp.ne.s32.totalorder %s43, %s45
      %p49 = scmp.eq.s32.totalorder %s9, 0
      %p50 = por %p48, %p49
      %p51 = scmp.ne.s32.totalorder %s43, %s45
      %p52 = scmp.eq.s32.totalorder %s14, 1
      %p53 = por %p51, %p52
      %p54 = scmp.ne.s32.totalorder %s45, %s46
      %p55 = scmp.eq.s32.totalorder %s14, 0
      %p56 = por %p54, %p55
      %p57 = scmp.ne.s32.totalorder %s45, %s46
      %p58 = scmp.eq.s32.totalorder %s15, 1
      %p59 = por %p57, %p58
      %p61 = scmp.ne.s32.totalorder %s46, %s60
      %p62 = scmp.eq.s32.totalorder %s15, 0
      %p63 = por %p61, %p62
      %s65 = sadd.s32 %s64, 1
      %p68 = scmp.eq.s32.totalorder %s9, 1
      %p69 = scmp.ne.s32.totalorder %s64, %s66
      %p70 = scmp.eq.s32.totalorder %s9, 0
      %p71 = por %p69, %p70
      %p72 = scmp.ne.s32.totalorder %s64, %s66
      %p73 = scmp.eq.s32.totalorder %s14, 1
      %p74 = por %p72, %p73
      %p75 = scmp.ne.s32.totalorder %s66, %s67
      %p76 = scmp.eq.s32.totalorder %s14, 0
      %p77 = por %p75, %p76
      %p78 = scmp.ne.s32.totalorder %s66, %s67
      %p79 = scmp.eq.s32.totalorder %s15, 1
      %p80 = por %p78, %p79
      %p82 = scmp.ne.s32.totalorder %s67, %s81
      %p83 = scmp.eq.s32.totalorder %s15, 0
      %p84 = por %p82, %p83
      %s85 = ssub.s32 %s9, %s16
      %p86 = scmp.eq.s32.totalorder %s85, 0
      %s88 = sadd.s32 %s87, 1
      %s89 = scalar_select %p86, %s87, %s88
      %p92 = pneg %p86
      %p93 = scmp.eq.s32.totalorder %s9, 1
      %p94 = por %p92, %p93
      %p95 = scmp.ne.s32.totalorder %s87, %s90
      %p96 = scmp.eq.s32.totalorder %s9, 0
      %p97 = por %p95, %p96
      %p98 = scmp.ne.s32.totalorder %s87, %s90
      %p99 = scmp.eq.s32.totalorder %s14, 1
      %p100 = por %p98, %p99
      %p101 = scmp.ne.s32.totalorder %s90, %s91
      %p102 = scmp.eq.s32.totalorder %s14, 0
      %p103 = por %p101, %p102
      %p104 = scmp.ne.s32.totalorder %s90, %s91
      %p105 = scmp.eq.s32.totalorder %s15, 1
      %p106 = por %p104, %p105
      %p108 = scmp.ne.s32.totalorder %s91, %s107
      %p109 = scmp.eq.s32.totalorder %s15, 0
      %p110 = por %p108, %p109
      %p111 = scmp.le.s32.totalorder 1, %s9
      %p112 = scmp.lt.s32.totalorder %s9, 3
      %p113 = pnand %p111, %p112
      %p114 = pneg %p113
      // Predicated region
      $region9: #{unet_grid_gating_signal3.1} parent=5 // pred_check
        _
      $region10: #{unet_grid_gating_signal3.1} parent=5 // pred_check_branch
        %116 = sbr.rel (%p113) target = $region12
      $region11: #{unet_grid_gating_signal3.1} parent=5 // pred_region
        %s117 = ssub.s32 %s9, 1
        // Predicated region
        $region13: #{unet_grid_gating_signal3.1} parent=11 // pred_check
          %p118 = pneg %p56
        $region14: #{unet_grid_gating_signal3.1} parent=11 // pred_check_branch
          %120 = sbr.rel (%p118) target = $region16
        $region15: #{unet_grid_gating_signal3.1} parent=11 // pred_region
          _
        $region16: #{unet_grid_gating_signal3.1} parent=11 // pred_fallthru
          _
        // Predicated region
        $region17: #{unet_grid_gating_signal3.1} parent=11 // pred_check
          %p121 = pneg %p77
        $region18: #{unet_grid_gating_signal3.1} parent=11 // pred_check_branch
          %123 = sbr.rel (%p121) target = $region20
        $region19: #{unet_grid_gating_signal3.1} parent=11 // pred_region
          _
        $region20: #{unet_grid_gating_signal3.1} parent=11 // pred_fallthru
          _
      $region12: #{unet_grid_gating_signal3.1} parent=5 // pred_fallthru
        _
      %p124 = scmp.lt.s32.totalorder %s9, 2
      // Predicated region
      $region21: #{unet_grid_gating_signal3.1} parent=5 // pred_check
        %p125 = pneg %p124
      $region22: #{unet_grid_gating_signal3.1} parent=5 // pred_check_branch
        %127 = sbr.rel (%p125) target = $region24
      $region23: #{unet_grid_gating_signal3.1} parent=5 // pred_region
        // Predicated region
        $region25: #{unet_grid_gating_signal3.1} parent=23 // pred_check
          %p128 = pneg %p29
        $region26: #{unet_grid_gating_signal3.1} parent=23 // pred_check_branch
          %130 = sbr.rel (%p128) target = $region28
        $region27: #{unet_grid_gating_signal3.1} parent=23 // pred_region
          %s131 = sand.u32 %s19, 1
          %s132 = sand.u32 %s19, 1
          %s133 = smul.addr %s132, 64
          %s134 = scalar_lea.vmem [#allocation2], %s133
          %s135 = smul.u32 8, %s9
          %s136 = smul.addr %s135, 4
          %s137 = scalar_lea.vmem %s0, %s136
          // Predicated region
          $region29: #{unet_grid_gating_signal3.1} parent=27 // pred_check
            _
          $region30: #{unet_grid_gating_signal3.1} parent=27 // pred_check_branch
            %139 = sbr.rel (0) target = $region32
          $region31: #{unet_grid_gating_signal3.1} parent=27 // pred_region
            // Predicated region
            $region33: #{unet_grid_gating_signal3.1} parent=31 // pred_check
              _
            $region34: #{unet_grid_gating_signal3.1} parent=31 // pred_check_branch
              %141 = sbr.rel (0) target = $region36
            $region35: #{unet_grid_gating_signal3.1} parent=31 // pred_region
              loop: start=0, step=1, limit=1
              $region37: #{unet_grid_gating_signal3.1} parent=35 // loop_pre_header
                _
              $region38: #{unet_grid_gating_signal3.1} parent=35 // loop_header
                %s143 = sphi 0, %s147
                %p144 = scmp.ge.s32.totalorder %s143, 1
                %s148 = sphi %s137, %s137
                %s149 = sphi %s134, %s134
              $region39: #{unet_grid_gating_signal3.1} parent=35 // loop_header_branch
                %146 = sbr.rel (%p144) target = $region43
              $region40: #{unet_grid_gating_signal3.1} parent=35 // loop_body
                %v150 = vld [vmem:[%s148] sm:$0xff]
                %151 = vst [vmem:[%s149] sm:$0xff] %v150
                %v152 = vld [vmem:[%s148 + $0x8] sm:$0xff]
                %153 = vst [vmem:[%s149 + $0x8] sm:$0xff] %v152
                %v154 = vld [vmem:[%s148 + $0x10] sm:$0xff]
                %155 = vst [vmem:[%s149 + $0x10] sm:$0xff] %v154
                %v156 = vld [vmem:[%s148 + $0x18] sm:$0xff]
                %157 = vst [vmem:[%s149 + $0x18] sm:$0xff] %v156
                %v158 = vld [vmem:[%s148 + $0x40] sm:$0xff]
                %159 = vst [vmem:[%s149 + $0x20] sm:$0xff] %v158
                %v160 = vld [vmem:[%s148 + $0x48] sm:$0xff]
                %161 = vst [vmem:[%s149 + $0x28] sm:$0xff] %v160
                %v162 = vld [vmem:[%s148 + $0x50] sm:$0xff]
                %163 = vst [vmem:[%s149 + $0x30] sm:$0xff] %v162
                %v164 = vld [vmem:[%s148 + $0x58] sm:$0xff]
                %165 = vst [vmem:[%s149 + $0x38] sm:$0xff] %v164
              $region41: #{unet_grid_gating_signal3.1} parent=35 // loop_footer
                %s147 = sadd.s32 1, %s143
              $region42: #{unet_grid_gating_signal3.1} parent=35 // loop_footer_branch
                %142 = sbr.rel target = $region38
              $region43: #{unet_grid_gating_signal3.1} parent=35 // loop_exit
                _
            $region36: #{unet_grid_gating_signal3.1} parent=31 // pred_fallthru
              _
            // Predicated region
            $region44: #{unet_grid_gating_signal3.1} parent=31 // pred_check
              _
            $region45: #{unet_grid_gating_signal3.1} parent=31 // pred_check_branch
              %167 = sbr.rel target = $region47
            $region46: #{unet_grid_gating_signal3.1} parent=31 // pred_region
              _
            $region47: #{unet_grid_gating_signal3.1} parent=31 // pred_fallthru
              _
          $region32: #{unet_grid_gating_signal3.1} parent=27 // pred_fallthru
            _
          %168 = vnop
        $region28: #{unet_grid_gating_signal3.1} parent=23 // pred_fallthru
          _
      $region24: #{unet_grid_gating_signal3.1} parent=5 // pred_fallthru
        _
      %p169 = scmp.le.s32.totalorder 1, %s9
      %p170 = scmp.lt.s32.totalorder %s9, 3
      %p171 = pnand %p169, %p170
      %p172 = pneg %p171
      // Predicated region
      $region48: #{unet_grid_gating_signal3.1} parent=5 // pred_check
        _
      $region49: #{unet_grid_gating_signal3.1} parent=5 // pred_check_branch
        %174 = sbr.rel (%p171) target = $region51
      $region50: #{unet_grid_gating_signal3.1} parent=5 // pred_region
        %s175 = ssub.s32 %s9, 1
        %s176 = sand.u32 %s22, 1
        %s177 = sand.u32 %s22, 1
        %s178 = smul.addr %s177, 64
        %s179 = scalar_lea.vmem [#allocation2], %s178
        // Predicated region
        $region52: #{unet_grid_gating_signal3.1} parent=50 // pred_check
          %p180 = pneg %p35
        $region53: #{unet_grid_gating_signal3.1} parent=50 // pred_check_branch
          %182 = sbr.rel (%p180) target = $region55
        $region54: #{unet_grid_gating_signal3.1} parent=50 // pred_region
          _
        $region55: #{unet_grid_gating_signal3.1} parent=50 // pred_fallthru
          _
        %s183 = sand.u32 %s22, 1
        %s184 = sand.u32 %s22, 1
        %s185 = smul.addr %s184, 64
        %s186 = scalar_lea.vmem [#allocation2], %s185
        %p187 = pneg %p35
        %p188 = pneg %p32
        %p189 = pneg %p56
        %p190 = pneg %p53
        %p191 = pneg %p77
        %p192 = pneg %p74
        %p193 = pneg %p103
        %p194 = pneg %p100
        %s195 = sand.u32 %s90, 1
        %s196 = sand.u32 %s90, 1
        %s197 = smul.addr %s196, 128
        %s198 = scalar_lea.vmem [#allocation3], %s197
        %s199 = smul.u32 8, %s14
        %s200 = smul.u32 8, %s14
        %v201 = vld [vmem:[%s1] sm:$0xff]
        %v202 = vld [vmem:[%s2] sm:$0xff]
        %v203 = vld [vmem:[%s179] sm:$0xff]
        %v204 = vld [vmem:[%s179 + $0x8] sm:$0xff]
        %v205 = vld [vmem:[%s179 + $0x10] sm:$0xff]
        %v206 = vld [vmem:[%s179 + $0x18] sm:$0xff]
        %208 = vset.pattern.permute.xlu0 0
        %209 = vperm.xlu0 %208, %v202
        %v210 = vpop.permute.xlu0 %209
        %v216 = vcombine.high %v203, %v203
        %v217 = vcombine.high %v204, %v204
        %v218 = vcombine.high %v205, %v205
        %v219 = vcombine.high %v206, %v206
        %vm220 = vcmask 31744
        %v222 = vsel %vm220, %v201, 0
        %vm224 = vcmask 1043456
        %v225 = vsel %vm224, %v203, 0
        %v227 = vsel %vm224, %v216, 0
        %v229 = vsel %vm224, %v204, 0
        %v231 = vsel %vm224, %v217, 0
        %v233 = vsel %vm224, %v205, 0
        %v235 = vsel %vm224, %v218, 0
        %v237 = vsel %vm224, %v206, 0
        %v239 = vsel %vm224, %v219, 0
        %241 = vmatprep.subr.mxu0 %v227
        %242 = vmatpush1.msra.mxu0 %v225
        %243 = vmatprep.subr.mxu0 0.0
        %244 = vmatpush1.msra.mxu0 0.0
        %245 = vmatprep.subr.mxu0 0.0
        %246 = vmatpush1.msra.mxu0 0.0
        %247 = vmatprep.subr.mxu0 0.0
        %248 = vmatpush1.msra.mxu0 0.0
        %249 = vmatprep.subr.mxu0 0.0
        %250 = vmatpush1.msra.mxu0 0.0
        %251 = vmatprep.subr.mxu0 0.0
        %252 = vmatpush1.msra.mxu0 0.0
        %253 = vmatprep.subr.mxu0 0.0
        %254 = vmatpush1.msra.mxu0 0.0
        %255 = vmatprep.subr.mxu0 0.0
        %256 = vmatpush1.msra.mxu0 0.0
        %257 = vmatprep.subr.mxu0 0.0
        %258 = vmatpush1.msra.mxu0 0.0
        %259 = vmatprep.subr.mxu0 0.0
        %260 = vmatpush1.msra.mxu0 0.0
        %261 = vmatprep.subr.mxu0 0.0
        %262 = vmatpush1.msra.mxu0 0.0
        %263 = vmatprep.subr.mxu0 0.0
        %264 = vmatpush1.msra.mxu0 0.0
        %265 = vmatprep.subr.mxu0 0.0
        %266 = vmatpush1.msra.mxu0 0.0
        %267 = vmatprep.subr.mxu0 0.0
        %268 = vmatpush1.msra.mxu0 0.0
        %269 = vmatprep.subr.mxu0 0.0
        %270 = vmatpush1.msra.mxu0 0.0
        %271 = vmatprep.subr.mxu0 0.0
        %272 = vmatpush1.msra.mxu0 0.0
        %273 = vmatprep.subr.mxu0 0.0
        %274 = vmatpush1.msra.mxu0 0.0
        %275 = vmatprep.subr.mxu0 0.0
        %276 = vmatpush1.msra.mxu0 0.0
        %277 = vmatprep.subr.mxu0 0.0
        %278 = vmatpush1.msra.mxu0 0.0
        %279 = vmatprep.subr.mxu0 0.0
        %280 = vmatpush1.msra.mxu0 0.0
        %281 = vmatprep.subr.mxu0 0.0
        %282 = vmatpush1.msra.mxu0 0.0
        %283 = vmatprep.subr.mxu0 0.0
        %284 = vmatpush1.msra.mxu0 0.0
        %285 = vmatprep.subr.mxu0 0.0
        %286 = vmatpush1.msra.mxu0 0.0
        %287 = vmatprep.subr.mxu0 0.0
        %288 = vmatpush1.msra.mxu0 0.0
        %289 = vmatprep.subr.mxu0 0.0
        %290 = vmatpush1.msra.mxu0 0.0
        %291 = vmatprep.subr.mxu0 0.0
        %292 = vmatpush1.msra.mxu0 0.0
        %293 = vmatprep.subr.mxu0 0.0
        %294 = vmatpush1.msra.mxu0 0.0
        %295 = vmatprep.subr.mxu0 0.0
        %296 = vmatpush1.msra.mxu0 0.0
        %297 = vmatprep.subr.mxu0 0.0
        %298 = vmatpush1.msra.mxu0 0.0
        %299 = vmatprep.subr.mxu0 0.0
        %300 = vmatpush1.msra.mxu0 0.0
        %301 = vmatprep.subr.mxu0 0.0
        %302 = vmatpush1.msra.mxu0 0.0
        %303 = vmatprep.subr.mxu0 0.0
        %304 = vmatpush1.msra.mxu0 0.0
        %305 = vmatprep.mubr.f32.mxu0 0.0
        %306 = vmatmul.mubr.f32.gmra.mrb[0].mxu0 %v222
        %v307 = vpop.f32.mrb[0].mxu0
        %v308 = vadd.f32 %v210, %v307
        %v309 = vpop.f32.mrb[0].mxu0
        %v310 = vadd.f32 %v210, %v309
        %311 = vdwg.mxu0
        %312 = vmatprep.subr.mxu0 %v231
        %313 = vmatpush1.msra.mxu0 %v229
        %314 = vmatprep.subr.mxu0 0.0
        %315 = vmatpush1.msra.mxu0 0.0
        %316 = vmatprep.subr.mxu0 0.0
        %317 = vmatpush1.msra.mxu0 0.0
        %318 = vmatprep.subr.mxu0 0.0
        %319 = vmatpush1.msra.mxu0 0.0
        %320 = vmatprep.subr.mxu0 0.0
        %321 = vmatpush1.msra.mxu0 0.0
        %322 = vmatprep.subr.mxu0 0.0
        %323 = vmatpush1.msra.mxu0 0.0
        %324 = vmatprep.subr.mxu0 0.0
        %325 = vmatpush1.msra.mxu0 0.0
        %326 = vmatprep.subr.mxu0 0.0
        %327 = vmatpush1.msra.mxu0 0.0
        %328 = vmatprep.subr.mxu0 0.0
        %329 = vmatpush1.msra.mxu0 0.0
        %330 = vmatprep.subr.mxu0 0.0
        %331 = vmatpush1.msra.mxu0 0.0
        %332 = vmatprep.subr.mxu0 0.0
        %333 = vmatpush1.msra.mxu0 0.0
        %334 = vmatprep.subr.mxu0 0.0
        %335 = vmatpush1.msra.mxu0 0.0
        %336 = vmatprep.subr.mxu0 0.0
        %337 = vmatpush1.msra.mxu0 0.0
        %338 = vmatprep.subr.mxu0 0.0
        %339 = vmatpush1.msra.mxu0 0.0
        %340 = vmatprep.subr.mxu0 0.0
        %341 = vmatpush1.msra.mxu0 0.0
        %342 = vmatprep.subr.mxu0 0.0
        %343 = vmatpush1.msra.mxu0 0.0
        %344 = vmatprep.subr.mxu0 0.0
        %345 = vmatpush1.msra.mxu0 0.0
        %346 = vmatprep.subr.mxu0 0.0
        %347 = vmatpush1.msra.mxu0 0.0
        %348 = vmatprep.subr.mxu0 0.0
        %349 = vmatpush1.msra.mxu0 0.0
        %350 = vmatprep.subr.mxu0 0.0
        %351 = vmatpush1.msra.mxu0 0.0
        %352 = vmatprep.subr.mxu0 0.0
        %353 = vmatpush1.msra.mxu0 0.0
        %354 = vmatprep.subr.mxu0 0.0
        %355 = vmatpush1.msra.mxu0 0.0
        %356 = vmatprep.subr.mxu0 0.0
        %357 = vmatpush1.msra.mxu0 0.0
        %358 = vmatprep.subr.mxu0 0.0
        %359 = vmatpush1.msra.mxu0 0.0
        %360 = vmatprep.subr.mxu0 0.0
        %361 = vmatpush1.msra.mxu0 0.0
        %362 = vmatprep.subr.mxu0 0.0
        %363 = vmatpush1.msra.mxu0 0.0
        %364 = vmatprep.subr.mxu0 0.0
        %365 = vmatpush1.msra.mxu0 0.0
        %366 = vmatprep.subr.mxu0 0.0
        %367 = vmatpush1.msra.mxu0 0.0
        %368 = vmatprep.subr.mxu0 0.0
        %369 = vmatpush1.msra.mxu0 0.0
        %370 = vmatprep.subr.mxu0 0.0
        %371 = vmatpush1.msra.mxu0 0.0
        %372 = vmatprep.subr.mxu0 0.0
        %373 = vmatpush1.msra.mxu0 0.0
        %374 = vmatprep.subr.mxu0 0.0
        %375 = vmatpush1.msra.mxu0 0.0
        %376 = vmatprep.mubr.f32.mxu0 0.0
        %377 = vmatmul.mubr.f32.gmra.mrb[0].mxu0 %v222
        %v378 = vpop.f32.mrb[0].mxu0
        %v379 = vadd.f32 %v210, %v378
        %v380 = vpop.f32.mrb[0].mxu0
        %v381 = vadd.f32 %v210, %v380
        %382 = vdwg.mxu0
        %383 = vmatprep.subr.mxu0 %v235
        %384 = vmatpush1.msra.mxu0 %v233
        %385 = vmatprep.subr.mxu0 0.0
        %386 = vmatpush1.msra.mxu0 0.0
        %387 = vmatprep.subr.mxu0 0.0
        %388 = vmatpush1.msra.mxu0 0.0
        %389 = vmatprep.subr.mxu0 0.0
        %390 = vmatpush1.msra.mxu0 0.0
        %391 = vmatprep.subr.mxu0 0.0
        %392 = vmatpush1.msra.mxu0 0.0
        %393 = vmatprep.subr.mxu0 0.0
        %394 = vmatpush1.msra.mxu0 0.0
        %395 = vmatprep.subr.mxu0 0.0
        %396 = vmatpush1.msra.mxu0 0.0
        %397 = vmatprep.subr.mxu0 0.0
        %398 = vmatpush1.msra.mxu0 0.0
        %399 = vmatprep.subr.mxu0 0.0
        %400 = vmatpush1.msra.mxu0 0.0
        %401 = vmatprep.subr.mxu0 0.0
        %402 = vmatpush1.msra.mxu0 0.0
        %403 = vmatprep.subr.mxu0 0.0
        %404 = vmatpush1.msra.mxu0 0.0
        %405 = vmatprep.subr.mxu0 0.0
        %406 = vmatpush1.msra.mxu0 0.0
        %407 = vmatprep.subr.mxu0 0.0
        %408 = vmatpush1.msra.mxu0 0.0
        %409 = vmatprep.subr.mxu0 0.0
        %410 = vmatpush1.msra.mxu0 0.0
        %411 = vmatprep.subr.mxu0 0.0
        %412 = vmatpush1.msra.mxu0 0.0
        %413 = vmatprep.subr.mxu0 0.0
        %414 = vmatpush1.msra.mxu0 0.0
        %415 = vmatprep.subr.mxu0 0.0
        %416 = vmatpush1.msra.mxu0 0.0
        %417 = vmatprep.subr.mxu0 0.0
        %418 = vmatpush1.msra.mxu0 0.0
        %419 = vmatprep.subr.mxu0 0.0
        %420 = vmatpush1.msra.mxu0 0.0
        %421 = vmatprep.subr.mxu0 0.0
        %422 = vmatpush1.msra.mxu0 0.0
        %423 = vmatprep.subr.mxu0 0.0
        %424 = vmatpush1.msra.mxu0 0.0
        %425 = vmatprep.subr.mxu0 0.0
        %426 = vmatpush1.msra.mxu0 0.0
        %427 = vmatprep.subr.mxu0 0.0
        %428 = vmatpush1.msra.mxu0 0.0
        %429 = vmatprep.subr.mxu0 0.0
        %430 = vmatpush1.msra.mxu0 0.0
        %431 = vmatprep.subr.mxu0 0.0
        %432 = vmatpush1.msra.mxu0 0.0
        %433 = vmatprep.subr.mxu0 0.0
        %434 = vmatpush1.msra.mxu0 0.0
        %435 = vmatprep.subr.mxu0 0.0
        %436 = vmatpush1.msra.mxu0 0.0
        %437 = vmatprep.subr.mxu0 0.0
        %438 = vmatpush1.msra.mxu0 0.0
        %439 = vmatprep.subr.mxu0 0.0
        %440 = vmatpush1.msra.mxu0 0.0
        %441 = vmatprep.subr.mxu0 0.0
        %442 = vmatpush1.msra.mxu0 0.0
        %443 = vmatprep.subr.mxu0 0.0
        %444 = vmatpush1.msra.mxu0 0.0
        %445 = vmatprep.subr.mxu0 0.0
        %446 = vmatpush1.msra.mxu0 0.0
        %447 = vmatprep.mubr.f32.mxu0 0.0
        %448 = vmatmul.mubr.f32.gmra.mrb[0].mxu0 %v222
        %v449 = vpop.f32.mrb[0].mxu0
        %v450 = vadd.f32 %v210, %v449
        %v451 = vpop.f32.mrb[0].mxu0
        %v452 = vadd.f32 %v210, %v451
        %453 = vdwg.mxu0
        %454 = vmatprep.subr.mxu0 %v239
        %455 = vmatpush1.msra.mxu0 %v237
        %456 = vmatprep.subr.mxu0 0.0
        %457 = vmatpush1.msra.mxu0 0.0
        %458 = vmatprep.subr.mxu0 0.0
        %459 = vmatpush1.msra.mxu0 0.0
        %460 = vmatprep.subr.mxu0 0.0
        %461 = vmatpush1.msra.mxu0 0.0
        %462 = vmatprep.subr.mxu0 0.0
        %463 = vmatpush1.msra.mxu0 0.0
        %464 = vmatprep.subr.mxu0 0.0
        %465 = vmatpush1.msra.mxu0 0.0
        %466 = vmatprep.subr.mxu0 0.0
        %467 = vmatpush1.msra.mxu0 0.0
        %468 = vmatprep.subr.mxu0 0.0
        %469 = vmatpush1.msra.mxu0 0.0
        %470 = vmatprep.subr.mxu0 0.0
        %471 = vmatpush1.msra.mxu0 0.0
        %472 = vmatprep.subr.mxu0 0.0
        %473 = vmatpush1.msra.mxu0 0.0
        %474 = vmatprep.subr.mxu0 0.0
        %475 = vmatpush1.msra.mxu0 0.0
        %476 = vmatprep.subr.mxu0 0.0
        %477 = vmatpush1.msra.mxu0 0.0
        %478 = vmatprep.subr.mxu0 0.0
        %479 = vmatpush1.msra.mxu0 0.0
        %480 = vmatprep.subr.mxu0 0.0
        %481 = vmatpush1.msra.mxu0 0.0
        %482 = vmatprep.subr.mxu0 0.0
        %483 = vmatpush1.msra.mxu0 0.0
        %484 = vmatprep.subr.mxu0 0.0
        %485 = vmatpush1.msra.mxu0 0.0
        %486 = vmatprep.subr.mxu0 0.0
        %487 = vmatpush1.msra.mxu0 0.0
        %488 = vmatprep.subr.mxu0 0.0
        %489 = vmatpush1.msra.mxu0 0.0
        %490 = vmatprep.subr.mxu0 0.0
        %491 = vmatpush1.msra.mxu0 0.0
        %492 = vmatprep.subr.mxu0 0.0
        %493 = vmatpush1.msra.mxu0 0.0
        %494 = vmatprep.subr.mxu0 0.0
        %495 = vmatpush1.msra.mxu0 0.0
        %496 = vmatprep.subr.mxu0 0.0
        %497 = vmatpush1.msra.mxu0 0.0
        %498 = vmatprep.subr.mxu0 0.0
        %499 = vmatpush1.msra.mxu0 0.0
        %500 = vmatprep.subr.mxu0 0.0
        %501 = vmatpush1.msra.mxu0 0.0
        %502 = vmatprep.subr.mxu0 0.0
        %503 = vmatpush1.msra.mxu0 0.0
        %504 = vmatprep.subr.mxu0 0.0
        %505 = vmatpush1.msra.mxu0 0.0
        %506 = vmatprep.subr.mxu0 0.0
        %507 = vmatpush1.msra.mxu0 0.0
        %508 = vmatprep.subr.mxu0 0.0
        %509 = vmatpush1.msra.mxu0 0.0
        %510 = vmatprep.subr.mxu0 0.0
        %511 = vmatpush1.msra.mxu0 0.0
        %512 = vmatprep.subr.mxu0 0.0
        %513 = vmatpush1.msra.mxu0 0.0
        %514 = vmatprep.subr.mxu0 0.0
        %515 = vmatpush1.msra.mxu0 0.0
        %516 = vmatprep.subr.mxu0 0.0
        %517 = vmatpush1.msra.mxu0 0.0
        %518 = vmatprep.mubr.f32.mxu0 0.0
        %519 = vmatmul.mubr.f32.gmra.mrb[0].mxu0 %v222
        %v520 = vpop.f32.mrb[0].mxu0
        %v521 = vadd.f32 %v210, %v520
        %v522 = vpop.f32.mrb[0].mxu0
        %v523 = vadd.f32 %v210, %v522
        %524 = vdwg.mxu0
        %v525 = vmax.f32 %v308, 0.0
        %v526 = vmax.f32 %v310, 0.0
        %v527 = vmax.f32 %v379, 0.0
        %v528 = vmax.f32 %v381, 0.0
        %v529 = vmax.f32 %v450, 0.0
        %v530 = vmax.f32 %v452, 0.0
        %v531 = vmax.f32 %v521, 0.0
        %v532 = vmax.f32 %v523, 0.0
        %533 = vst [vmem:[%s198] sm:$0xff] %v525
        %534 = vst [vmem:[%s198 + $0x8] sm:$0xff] %v526
        %535 = vst [vmem:[%s198 + $0x10] sm:$0xff] %v527
        %536 = vst [vmem:[%s198 + $0x18] sm:$0xff] %v528
        %537 = vst [vmem:[%s198 + $0x20] sm:$0xff] %v529
        %538 = vst [vmem:[%s198 + $0x28] sm:$0xff] %v530
        %539 = vst [vmem:[%s198 + $0x30] sm:$0xff] %v531
        %540 = vst [vmem:[%s198 + $0x38] sm:$0xff] %v532
        %s541 = scalar_lea.vmem %s179, 32 [#allocation2]
        %v542 = vld [vmem:[%s541] sm:$0xff]
        %v543 = vld [vmem:[%s541 + $0x8] sm:$0xff]
        %v544 = vld [vmem:[%s541 + $0x10] sm:$0xff]
        %v545 = vld [vmem:[%s541 + $0x18] sm:$0xff]
        %v550 = vcombine.high %v542, %v542
        %v551 = vcombine.high %v543, %v543
        %v552 = vcombine.high %v544, %v544
        %v553 = vcombine.high %v545, %v545
        %v554 = vsel %vm224, %v542, 0
        %v556 = vsel %vm224, %v550, 0
        %v558 = vsel %vm224, %v543, 0
        %v560 = vsel %vm224, %v551, 0
        %v562 = vsel %vm224, %v544, 0
        %v564 = vsel %vm224, %v552, 0
        %v566 = vsel %vm224, %v545, 0
        %v568 = vsel %vm224, %v553, 0
        %570 = vmatprep.subr.mxu0 %v556
        %571 = vmatpush1.msra.mxu0 %v554
        %572 = vmatprep.subr.mxu0 0.0
        %573 = vmatpush1.msra.mxu0 0.0
        %574 = vmatprep.subr.mxu0 0.0
        %575 = vmatpush1.msra.mxu0 0.0
        %576 = vmatprep.subr.mxu0 0.0
        %577 = vmatpush1.msra.mxu0 0.0
        %578 = vmatprep.subr.mxu0 0.0
        %579 = vmatpush1.msra.mxu0 0.0
        %580 = vmatprep.subr.mxu0 0.0
        %581 = vmatpush1.msra.mxu0 0.0
        %582 = vmatprep.subr.mxu0 0.0
        %583 = vmatpush1.msra.mxu0 0.0
        %584 = vmatprep.subr.mxu0 0.0
        %585 = vmatpush1.msra.mxu0 0.0
        %586 = vmatprep.subr.mxu0 0.0
        %587 = vmatpush1.msra.mxu0 0.0
        %588 = vmatprep.subr.mxu0 0.0
        %589 = vmatpush1.msra.mxu0 0.0
        %590 = vmatprep.subr.mxu0 0.0
        %591 = vmatpush1.msra.mxu0 0.0
        %592 = vmatprep.subr.mxu0 0.0
        %593 = vmatpush1.msra.mxu0 0.0
        %594 = vmatprep.subr.mxu0 0.0
        %595 = vmatpush1.msra.mxu0 0.0
        %596 = vmatprep.subr.mxu0 0.0
        %597 = vmatpush1.msra.mxu0 0.0
        %598 = vmatprep.subr.mxu0 0.0
        %599 = vmatpush1.msra.mxu0 0.0
        %600 = vmatprep.subr.mxu0 0.0
        %601 = vmatpush1.msra.mxu0 0.0
        %602 = vmatprep.subr.mxu0 0.0
        %603 = vmatpush1.msra.mxu0 0.0
        %604 = vmatprep.subr.mxu0 0.0
        %605 = vmatpush1.msra.mxu0 0.0
        %606 = vmatprep.subr.mxu0 0.0
        %607 = vmatpush1.msra.mxu0 0.0
        %608 = vmatprep.subr.mxu0 0.0
        %609 = vmatpush1.msra.mxu0 0.0
        %610 = vmatprep.subr.mxu0 0.0
        %611 = vmatpush1.msra.mxu0 0.0
        %612 = vmatprep.subr.mxu0 0.0
        %613 = vmatpush1.msra.mxu0 0.0
        %614 = vmatprep.subr.mxu0 0.0
        %615 = vmatpush1.msra.mxu0 0.0
        %616 = vmatprep.subr.mxu0 0.0
        %617 = vmatpush1.msra.mxu0 0.0
        %618 = vmatprep.subr.mxu0 0.0
        %619 = vmatpush1.msra.mxu0 0.0
        %620 = vmatprep.subr.mxu0 0.0
        %621 = vmatpush1.msra.mxu0 0.0
        %622 = vmatprep.subr.mxu0 0.0
        %623 = vmatpush1.msra.mxu0 0.0
        %624 = vmatprep.subr.mxu0 0.0
        %625 = vmatpush1.msra.mxu0 0.0
        %626 = vmatprep.subr.mxu0 0.0
        %627 = vmatpush1.msra.mxu0 0.0
        %628 = vmatprep.subr.mxu0 0.0
        %629 = vmatpush1.msra.mxu0 0.0
        %630 = vmatprep.subr.mxu0 0.0
        %631 = vmatpush1.msra.mxu0 0.0
        %632 = vmatprep.subr.mxu0 0.0
        %633 = vmatpush1.msra.mxu0 0.0
        %634 = vmatprep.mubr.f32.mxu0 0.0
        %635 = vmatmul.mubr.f32.gmra.mrb[0].mxu0 %v222
        %v636 = vpop.f32.mrb[0].mxu0
        %v637 = vadd.f32 %v210, %v636
        %v638 = vpop.f32.mrb[0].mxu0
        %v639 = vadd.f32 %v210, %v638
        %640 = vdwg.mxu0
        %641 = vmatprep.subr.mxu0 %v560
        %642 = vmatpush1.msra.mxu0 %v558
        %643 = vmatprep.subr.mxu0 0.0
        %644 = vmatpush1.msra.mxu0 0.0
        %645 = vmatprep.subr.mxu0 0.0
        %646 = vmatpush1.msra.mxu0 0.0
        %647 = vmatprep.subr.mxu0 0.0
        %648 = vmatpush1.msra.mxu0 0.0
        %649 = vmatprep.subr.mxu0 0.0
        %650 = vmatpush1.msra.mxu0 0.0
        %651 = vmatprep.subr.mxu0 0.0
        %652 = vmatpush1.msra.mxu0 0.0
        %653 = vmatprep.subr.mxu0 0.0
        %654 = vmatpush1.msra.mxu0 0.0
        %655 = vmatprep.subr.mxu0 0.0
        %656 = vmatpush1.msra.mxu0 0.0
        %657 = vmatprep.subr.mxu0 0.0
        %658 = vmatpush1.msra.mxu0 0.0
        %659 = vmatprep.subr.mxu0 0.0
        %660 = vmatpush1.msra.mxu0 0.0
        %661 = vmatprep.subr.mxu0 0.0
        %662 = vmatpush1.msra.mxu0 0.0
        %663 = vmatprep.subr.mxu0 0.0
        %664 = vmatpush1.msra.mxu0 0.0
        %665 = vmatprep.subr.mxu0 0.0
        %666 = vmatpush1.msra.mxu0 0.0
        %667 = vmatprep.subr.mxu0 0.0
        %668 = vmatpush1.msra.mxu0 0.0
        %669 = vmatprep.subr.mxu0 0.0
        %670 = vmatpush1.msra.mxu0 0.0
        %671 = vmatprep.subr.mxu0 0.0
        %672 = vmatpush1.msra.mxu0 0.0
        %673 = vmatprep.subr.mxu0 0.0
        %674 = vmatpush1.msra.mxu0 0.0
        %675 = vmatprep.subr.mxu0 0.0
        %676 = vmatpush1.msra.mxu0 0.0
        %677 = vmatprep.subr.mxu0 0.0
        %678 = vmatpush1.msra.mxu0 0.0
        %679 = vmatprep.subr.mxu0 0.0
        %680 = vmatpush1.msra.mxu0 0.0
        %681 = vmatprep.subr.mxu0 0.0
        %682 = vmatpush1.msra.mxu0 0.0
        %683 = vmatprep.subr.mxu0 0.0
        %684 = vmatpush1.msra.mxu0 0.0
        %685 = vmatprep.subr.mxu0 0.0
        %686 = vmatpush1.msra.mxu0 0.0
        %687 = vmatprep.subr.mxu0 0.0
        %688 = vmatpush1.msra.mxu0 0.0
        %689 = vmatprep.subr.mxu0 0.0
        %690 = vmatpush1.msra.mxu0 0.0
        %691 = vmatprep.subr.mxu0 0.0
        %692 = vmatpush1.msra.mxu0 0.0
        %693 = vmatprep.subr.mxu0 0.0
        %694 = vmatpush1.msra.mxu0 0.0
        %695 = vmatprep.subr.mxu0 0.0
        %696 = vmatpush1.msra.mxu0 0.0
        %697 = vmatprep.subr.mxu0 0.0
        %698 = vmatpush1.msra.mxu0 0.0
        %699 = vmatprep.subr.mxu0 0.0
        %700 = vmatpush1.msra.mxu0 0.0
        %701 = vmatprep.subr.mxu0 0.0
        %702 = vmatpush1.msra.mxu0 0.0
        %703 = vmatprep.subr.mxu0 0.0
        %704 = vmatpush1.msra.mxu0 0.0
        %705 = vmatprep.mubr.f32.mxu0 0.0
        %706 = vmatmul.mubr.f32.gmra.mrb[0].mxu0 %v222
        %v707 = vpop.f32.mrb[0].mxu0
        %v708 = vadd.f32 %v210, %v707
        %v709 = vpop.f32.mrb[0].mxu0
        %v710 = vadd.f32 %v210, %v709
        %711 = vdwg.mxu0
        %712 = vmatprep.subr.mxu0 %v564
        %713 = vmatpush1.msra.mxu0 %v562
        %714 = vmatprep.subr.mxu0 0.0
        %715 = vmatpush1.msra.mxu0 0.0
        %716 = vmatprep.subr.mxu0 0.0
        %717 = vmatpush1.msra.mxu0 0.0
        %718 = vmatprep.subr.mxu0 0.0
        %719 = vmatpush1.msra.mxu0 0.0
        %720 = vmatprep.subr.mxu0 0.0
        %721 = vmatpush1.msra.mxu0 0.0
        %722 = vmatprep.subr.mxu0 0.0
        %723 = vmatpush1.msra.mxu0 0.0
        %724 = vmatprep.subr.mxu0 0.0
        %725 = vmatpush1.msra.mxu0 0.0
        %726 = vmatprep.subr.mxu0 0.0
        %727 = vmatpush1.msra.mxu0 0.0
        %728 = vmatprep.subr.mxu0 0.0
        %729 = vmatpush1.msra.mxu0 0.0
        %730 = vmatprep.subr.mxu0 0.0
        %731 = vmatpush1.msra.mxu0 0.0
        %732 = vmatprep.subr.mxu0 0.0
        %733 = vmatpush1.msra.mxu0 0.0
        %734 = vmatprep.subr.mxu0 0.0
        %735 = vmatpush1.msra.mxu0 0.0
        %736 = vmatprep.subr.mxu0 0.0
        %737 = vmatpush1.msra.mxu0 0.0
        %738 = vmatprep.subr.mxu0 0.0
        %739 = vmatpush1.msra.mxu0 0.0
        %740 = vmatprep.subr.mxu0 0.0
        %741 = vmatpush1.msra.mxu0 0.0
        %742 = vmatprep.subr.mxu0 0.0
        %743 = vmatpush1.msra.mxu0 0.0
        %744 = vmatprep.subr.mxu0 0.0
        %745 = vmatpush1.msra.mxu0 0.0
        %746 = vmatprep.subr.mxu0 0.0
        %747 = vmatpush1.msra.mxu0 0.0
        %748 = vmatprep.subr.mxu0 0.0
        %749 = vmatpush1.msra.mxu0 0.0
        %750 = vmatprep.subr.mxu0 0.0
        %751 = vmatpush1.msra.mxu0 0.0
        %752 = vmatprep.subr.mxu0 0.0
        %753 = vmatpush1.msra.mxu0 0.0
        %754 = vmatprep.subr.mxu0 0.0
        %755 = vmatpush1.msra.mxu0 0.0
        %756 = vmatprep.subr.mxu0 0.0
        %757 = vmatpush1.msra.mxu0 0.0
        %758 = vmatprep.subr.mxu0 0.0
        %759 = vmatpush1.msra.mxu0 0.0
        %760 = vmatprep.subr.mxu0 0.0
        %761 = vmatpush1.msra.mxu0 0.0
        %762 = vmatprep.subr.mxu0 0.0
        %763 = vmatpush1.msra.mxu0 0.0
        %764 = vmatprep.subr.mxu0 0.0
        %765 = vmatpush1.msra.mxu0 0.0
        %766 = vmatprep.subr.mxu0 0.0
        %767 = vmatpush1.msra.mxu0 0.0
        %768 = vmatprep.subr.mxu0 0.0
        %769 = vmatpush1.msra.mxu0 0.0
        %770 = vmatprep.subr.mxu0 0.0
        %771 = vmatpush1.msra.mxu0 0.0
        %772 = vmatprep.subr.mxu0 0.0
        %773 = vmatpush1.msra.mxu0 0.0
        %774 = vmatprep.subr.mxu0 0.0
        %775 = vmatpush1.msra.mxu0 0.0
        %776 = vmatprep.mubr.f32.mxu0 0.0
        %777 = vmatmul.mubr.f32.gmra.mrb[0].mxu0 %v222
        %v778 = vpop.f32.mrb[0].mxu0
        %v779 = vadd.f32 %v210, %v778
        %v780 = vpop.f32.mrb[0].mxu0
        %v781 = vadd.f32 %v210, %v780
        %782 = vdwg.mxu0
        %783 = vmatprep.subr.mxu0 %v568
        %784 = vmatpush1.msra.mxu0 %v566
        %785 = vmatprep.subr.mxu0 0.0
        %786 = vmatpush1.msra.mxu0 0.0
        %787 = vmatprep.subr.mxu0 0.0
        %788 = vmatpush1.msra.mxu0 0.0
        %789 = vmatprep.subr.mxu0 0.0
        %790 = vmatpush1.msra.mxu0 0.0
        %791 = vmatprep.subr.mxu0 0.0
        %792 = vmatpush1.msra.mxu0 0.0
        %793 = vmatprep.subr.mxu0 0.0
        %794 = vmatpush1.msra.mxu0 0.0
        %795 = vmatprep.subr.mxu0 0.0
        %796 = vmatpush1.msra.mxu0 0.0
        %797 = vmatprep.subr.mxu0 0.0
        %798 = vmatpush1.msra.mxu0 0.0
        %799 = vmatprep.subr.mxu0 0.0
        %800 = vmatpush1.msra.mxu0 0.0
        %801 = vmatprep.subr.mxu0 0.0
        %802 = vmatpush1.msra.mxu0 0.0
        %803 = vmatprep.subr.mxu0 0.0
        %804 = vmatpush1.msra.mxu0 0.0
        %805 = vmatprep.subr.mxu0 0.0
        %806 = vmatpush1.msra.mxu0 0.0
        %807 = vmatprep.subr.mxu0 0.0
        %808 = vmatpush1.msra.mxu0 0.0
        %809 = vmatprep.subr.mxu0 0.0
        %810 = vmatpush1.msra.mxu0 0.0
        %811 = vmatprep.subr.mxu0 0.0
        %812 = vmatpush1.msra.mxu0 0.0
        %813 = vmatprep.subr.mxu0 0.0
        %814 = vmatpush1.msra.mxu0 0.0
        %815 = vmatprep.subr.mxu0 0.0
        %816 = vmatpush1.msra.mxu0 0.0
        %817 = vmatprep.subr.mxu0 0.0
        %818 = vmatpush1.msra.mxu0 0.0
        %819 = vmatprep.subr.mxu0 0.0
        %820 = vmatpush1.msra.mxu0 0.0
        %821 = vmatprep.subr.mxu0 0.0
        %822 = vmatpush1.msra.mxu0 0.0
        %823 = vmatprep.subr.mxu0 0.0
        %824 = vmatpush1.msra.mxu0 0.0
        %825 = vmatprep.subr.mxu0 0.0
        %826 = vmatpush1.msra.mxu0 0.0
        %827 = vmatprep.subr.mxu0 0.0
        %828 = vmatpush1.msra.mxu0 0.0
        %829 = vmatprep.subr.mxu0 0.0
        %830 = vmatpush1.msra.mxu0 0.0
        %831 = vmatprep.subr.mxu0 0.0
        %832 = vmatpush1.msra.mxu0 0.0
        %833 = vmatprep.subr.mxu0 0.0
        %834 = vmatpush1.msra.mxu0 0.0
        %835 = vmatprep.subr.mxu0 0.0
        %836 = vmatpush1.msra.mxu0 0.0
        %837 = vmatprep.subr.mxu0 0.0
        %838 = vmatpush1.msra.mxu0 0.0
        %839 = vmatprep.subr.mxu0 0.0
        %840 = vmatpush1.msra.mxu0 0.0
        %841 = vmatprep.subr.mxu0 0.0
        %842 = vmatpush1.msra.mxu0 0.0
        %843 = vmatprep.subr.mxu0 0.0
        %844 = vmatpush1.msra.mxu0 0.0
        %845 = vmatprep.subr.mxu0 0.0
        %846 = vmatpush1.msra.mxu0 0.0
        %847 = vmatprep.mubr.f32.mxu0 0.0
        %848 = vmatmul.mubr.f32.gmra.mrb[0].mxu0 %v222
        %v849 = vpop.f32.mrb[0].mxu0
        %v850 = vadd.f32 %v210, %v849
        %v851 = vpop.f32.mrb[0].mxu0
        %v852 = vadd.f32 %v210, %v851
        %853 = vdwg.mxu0
        %v854 = vmax.f32 %v637, 0.0
        %v855 = vmax.f32 %v639, 0.0
        %v856 = vmax.f32 %v708, 0.0
        %v857 = vmax.f32 %v710, 0.0
        %v858 = vmax.f32 %v779, 0.0
        %v859 = vmax.f32 %v781, 0.0
        %v860 = vmax.f32 %v850, 0.0
        %v861 = vmax.f32 %v852, 0.0
        %s862 = scalar_lea.vmem %s198, 64 [#allocation3]
        %863 = vst [vmem:[%s862] sm:$0xff] %v854
        %864 = vst [vmem:[%s862 + $0x8] sm:$0xff] %v855
        %865 = vst [vmem:[%s862 + $0x10] sm:$0xff] %v856
        %866 = vst [vmem:[%s862 + $0x18] sm:$0xff] %v857
        %867 = vst [vmem:[%s862 + $0x20] sm:$0xff] %v858
        %868 = vst [vmem:[%s862 + $0x28] sm:$0xff] %v859
        %869 = vst [vmem:[%s862 + $0x30] sm:$0xff] %v860
        %870 = vst [vmem:[%s862 + $0x38] sm:$0xff] %v861
        %s871 = sand.u32 %s90, 1
        %s872 = sand.u32 %s90, 1
        %s873 = smul.addr %s872, 128
        %s874 = scalar_lea.vmem [#allocation3], %s873
        // Predicated region
        $region56: #{unet_grid_gating_signal3.1} parent=50 // pred_check
          %p875 = pneg %p100
        $region57: #{unet_grid_gating_signal3.1} parent=50 // pred_check_branch
          %877 = sbr.rel (%p875) target = $region59
        $region58: #{unet_grid_gating_signal3.1} parent=50 // pred_region
          %s878 = smul.u32 8, %s14
          %s879 = smul.addr %s878, 8
          %s880 = scalar_lea.vmem %s3, %s879
          // Predicated region
          $region60: #{unet_grid_gating_signal3.1} parent=58 // pred_check
            _
          $region61: #{unet_grid_gating_signal3.1} parent=58 // pred_check_branch
            %882 = sbr.rel (0) target = $region63
          $region62: #{unet_grid_gating_signal3.1} parent=58 // pred_region
            // Predicated region
            $region64: #{unet_grid_gating_signal3.1} parent=62 // pred_check
              _
            $region65: #{unet_grid_gating_signal3.1} parent=62 // pred_check_branch
              %884 = sbr.rel (0) target = $region67
            $region66: #{unet_grid_gating_signal3.1} parent=62 // pred_region
              loop: start=0, step=1, limit=1
              $region68: #{unet_grid_gating_signal3.1} parent=66 // loop_pre_header
                _
              $region69: #{unet_grid_gating_signal3.1} parent=66 // loop_header
                %s886 = sphi 0, %s890
                %p887 = scmp.ge.s32.totalorder %s886, 1
                %s891 = sphi %s874, %s874
                %s892 = sphi %s880, %s880
              $region70: #{unet_grid_gating_signal3.1} parent=66 // loop_header_branch
                %889 = sbr.rel (%p887) target = $region74
              $region71: #{unet_grid_gating_signal3.1} parent=66 // loop_body
                %v893 = vld [vmem:[%s891] sm:$0xff]
                %894 = vst [vmem:[%s892] sm:$0xff] %v893
                %v895 = vld [vmem:[%s891 + $0x8] sm:$0xff]
                %896 = vst [vmem:[%s892 + $0x8] sm:$0xff] %v895
                %v897 = vld [vmem:[%s891 + $0x10] sm:$0xff]
                %898 = vst [vmem:[%s892 + $0x10] sm:$0xff] %v897
                %v899 = vld [vmem:[%s891 + $0x18] sm:$0xff]
                %900 = vst [vmem:[%s892 + $0x18] sm:$0xff] %v899
                %v901 = vld [vmem:[%s891 + $0x20] sm:$0xff]
                %902 = vst [vmem:[%s892 + $0x20] sm:$0xff] %v901
                %v903 = vld [vmem:[%s891 + $0x28] sm:$0xff]
                %904 = vst [vmem:[%s892 + $0x28] sm:$0xff] %v903
                %v905 = vld [vmem:[%s891 + $0x30] sm:$0xff]
                %906 = vst [vmem:[%s892 + $0x30] sm:$0xff] %v905
                %v907 = vld [vmem:[%s891 + $0x38] sm:$0xff]
                %908 = vst [vmem:[%s892 + $0x38] sm:$0xff] %v907
                %v909 = vld [vmem:[%s891 + $0x40] sm:$0xff]
                %910 = vst [vmem:[%s892 + $0x80] sm:$0xff] %v909
                %v911 = vld [vmem:[%s891 + $0x48] sm:$0xff]
                %912 = vst [vmem:[%s892 + $0x88] sm:$0xff] %v911
                %v913 = vld [vmem:[%s891 + $0x50] sm:$0xff]
                %914 = vst [vmem:[%s892 + $0x90] sm:$0xff] %v913
                %v915 = vld [vmem:[%s891 + $0x58] sm:$0xff]
                %916 = vst [vmem:[%s892 + $0x98] sm:$0xff] %v915
                %v917 = vld [vmem:[%s891 + $0x60] sm:$0xff]
                %918 = vst [vmem:[%s892 + $0xa0] sm:$0xff] %v917
                %v919 = vld [vmem:[%s891 + $0x68] sm:$0xff]
                %920 = vst [vmem:[%s892 + $0xa8] sm:$0xff] %v919
                %v921 = vld [vmem:[%s891 + $0x70] sm:$0xff]
                %922 = vst [vmem:[%s892 + $0xb0] sm:$0xff] %v921
                %v923 = vld [vmem:[%s891 + $0x78] sm:$0xff]
                %924 = vst [vmem:[%s892 + $0xb8] sm:$0xff] %v923
              $region72: #{unet_grid_gating_signal3.1} parent=66 // loop_footer
                %s890 = sadd.s32 1, %s886
              $region73: #{unet_grid_gating_signal3.1} parent=66 // loop_footer_branch
                %885 = sbr.rel target = $region69
              $region74: #{unet_grid_gating_signal3.1} parent=66 // loop_exit
                _
            $region67: #{unet_grid_gating_signal3.1} parent=62 // pred_fallthru
              _
            // Predicated region
            $region75: #{unet_grid_gating_signal3.1} parent=62 // pred_check
              _
            $region76: #{unet_grid_gating_signal3.1} parent=62 // pred_check_branch
              %926 = sbr.rel target = $region78
            $region77: #{unet_grid_gating_signal3.1} parent=62 // pred_region
              _
            $region78: #{unet_grid_gating_signal3.1} parent=62 // pred_fallthru
              _
          $region63: #{unet_grid_gating_signal3.1} parent=58 // pred_fallthru
            _
          %927 = vnop
        $region59: #{unet_grid_gating_signal3.1} parent=50 // pred_fallthru
          _
      $region51: #{unet_grid_gating_signal3.1} parent=5 // pred_fallthru
        _
      %p928 = scmp.le.s32.totalorder 2, %s9
      // Predicated region
      $region79: #{unet_grid_gating_signal3.1} parent=5 // pred_check
        %p929 = pneg %p928
      $region80: #{unet_grid_gating_signal3.1} parent=5 // pred_check_branch
        %931 = sbr.rel (%p929) target = $region82
      $region81: #{unet_grid_gating_signal3.1} parent=5 // pred_region
        %s932 = ssub.s32 %s9, 2
        // Predicated region
        $region83: #{unet_grid_gating_signal3.1} parent=81 // pred_check
          %p933 = pneg %p106
        $region84: #{unet_grid_gating_signal3.1} parent=81 // pred_check_branch
          %935 = sbr.rel (%p933) target = $region86
        $region85: #{unet_grid_gating_signal3.1} parent=81 // pred_region
          %s936 = sand.u32 %s91, 1
          %s937 = sand.u32 %s91, 1
          %s938 = smul.addr %s937, 128
          %s939 = scalar_lea.vmem [#allocation3], %s938
        $region86: #{unet_grid_gating_signal3.1} parent=81 // pred_fallthru
          _
      $region82: #{unet_grid_gating_signal3.1} parent=5 // pred_fallthru
        _
    $region6: #{unet_grid_gating_signal3.1} parent=1 // loop_footer
      %s13 = sadd.s32 1, %s9
    $region7: #{unet_grid_gating_signal3.1} parent=1 // loop_footer_branch
      %8 = sbr.rel target = $region3
    $region8: #{unet_grid_gating_signal3.1} parent=1 // loop_exit
      _

</llo_original>
